<compile_context>
chip_gen: v6e
topology: v6e:2x2x1
jax: 0.10.0
libtpu: 0.0.40
codegen_flags: <defaults>
</compile_context>

<pallas_src>
import jax
import jax.numpy as jnp
from jax.experimental import pallas as pl
from jax.experimental.pallas import tpu as pltpu

# ---------------------------------------------------------------------------
# Landmark indices (order of the tuple-unpack in MouthModel.forward).
NOSE, R_EB, L_EB = 0, 1, 2
TR_EYE, BR_EYE, TL_EYE, BL_EYE = 3, 4, 5, 6
R_INEYE, L_INEYE = 7, 8
TOP_LIP1, TOP_LIP2, BOT_LIP1, BOT_LIP2 = 9, 10, 11, 12
R_MOUTH, L_MOUTH = 13, 14

N_PTS = 15
PTS_ROWS = 16            # 15 landmark rows + 1 zero pad row (sublane aligned)
N_FEAT = 13
FEAT_ROWS = 16           # 13 feature rows + 3 pad rows (sublane aligned)
MIN_LANE_TILE = 128      # lane granularity
MAX_LANE_TILE = 2048     # cap per grid step; >1 tile => megacore split on v7x


# ---------------------------------------------------------------------------
# Kernel: one (16 feature rows x LANE faces) tile per grid step.
def mouth_kernel(pts_ref, out_ref):
    """pts_ref: (2, PTS_ROWS, LANE) = [coord(x/y), point, face]; out: (16, LANE)."""
    px = pts_ref[0]                           # (PTS_ROWS, LANE) x coordinates
    py = pts_ref[1]                           # (PTS_ROWS, LANE) y coordinates
    lane = out_ref.shape[1]

    def X(i):
        return px[i:i + 1, :]                 # (1, LANE)

    def Y(i):
        return py[i:i + 1, :]                 # (1, LANE)

    # Inner-eye line parameters (per face), norm reciprocal computed once.
    ax, ay = X(R_INEYE), Y(R_INEYE)
    bx, by = X(L_INEYE), Y(L_INEYE)
    dyl = by - ay
    dxl = bx - ax
    cst = bx * ay - by * ax
    inv_den = pl.reciprocal(jnp.sqrt(dyl * dyl + dxl * dxl))   # exact (approx=False)

    def d_line(i):                            # point i -> inner-eye-line distance
        return jnp.abs(dyl * X(i) - dxl * Y(i) + cst) * inv_den

    def d_pp(i, j):                           # point i -> point j distance
        dx = X(j) - X(i)
        dy = Y(j) - Y(i)
        return jnp.sqrt(dx * dx + dy * dy)

    y_reb, y_leb = d_line(R_EB), d_line(L_EB)
    y_rm, y_lm = d_line(R_MOUTH), d_line(L_MOUTH)
    ybot1, ytop1 = d_line(BOT_LIP1), d_line(TOP_LIP1)
    ytop2, ynose = d_line(TOP_LIP2), d_line(NOSE)

    d_reye = d_pp(TR_EYE, BR_EYE)
    d_leye = d_pp(TL_EYE, BL_EYE)
    d_reye_eb = d_pp(TR_EYE, R_EB)
    d_leye_eb = d_pp(TL_EYE, L_EB)
    h1 = d_pp(TOP_LIP1, BOT_LIP2)
    h2 = d_pp(TOP_LIP2, BOT_LIP1)
    w = d_pp(R_MOUTH, L_MOUTH)

    rows = [
        y_reb / y_leb,          # rightleft_eb_ratio
        d_reye / d_reye_eb,     # righteye_eb_ratio
        d_leye / d_leye_eb,     # lefteye_eb_ratio
        h1,                     # h1
        h1 / w,                 # h1w_ratio
        h2 / h1,                # h2h1_ratio
        ynose / ytop2,          # nosetop2
        y_rm - ybot1,           # yright_bot1
        y_lm - ybot1,           # yleft_bot1
        y_rm - ytop1,           # yright_top1
        y_lm - ytop1,           # yleft_top1
        y_rm - ytop2,           # yright_top2
        y_lm - ytop2,           # yleft_top2
    ]
    for k, val in enumerate(rows):
        out_ref[k:k + 1, :] = val
    out_ref[N_FEAT:FEAT_ROWS, :] = jnp.zeros((FEAT_ROWS - N_FEAT, lane), jnp.float32)


# ---------------------------------------------------------------------------
def _round_up(x, m):
    return ((x + m - 1) // m) * m


@jax.jit
def _forward_impl(landmarks):
    """landmarks: f32[B, 15, 2] -> features f32[B, 13]."""
    B = landmarks.shape[0]
    if B <= MAX_LANE_TILE:
        lane_tile = _round_up(max(B, 1), MIN_LANE_TILE)   # one block for small B
    else:
        lane_tile = MAX_LANE_TILE                         # >=2 parallel tiles
    b_pad = _round_up(B, lane_tile)
    n_tiles = b_pad // lane_tile

    # Compact coordinate slab: (2, 16, B) = [x/y plane, point row, face lane].
    lm = landmarks.astype(jnp.float32)                    # (B, 15, 2)
    pts = jnp.transpose(lm, (2, 1, 0))                    # (2, 15, B)
    pts = jnp.concatenate(
        [pts, jnp.zeros((2, PTS_ROWS - N_PTS, B), jnp.float32)], axis=1)
    if b_pad > B:
        # Edge-replicate the last real face into pad lanes: keeps the padded
        # (discarded) lanes finite instead of producing 0/0 -> NaN.
        pts = jnp.pad(pts, ((0, 0), (0, 0), (0, b_pad - B)), mode="edge")

    cost = pl.CostEstimate(
        flops=130 * b_pad,
        transcendentals=17 * b_pad,
        bytes_accessed=(2 * PTS_ROWS + FEAT_ROWS) * 4 * b_pad,
    )

    out = pl.pallas_call(
        mouth_kernel,
        out_shape=jax.ShapeDtypeStruct((FEAT_ROWS, b_pad), jnp.float32),
        grid=(n_tiles,),
        in_specs=[pl.BlockSpec((2, PTS_ROWS, lane_tile), lambda i: (0, 0, i))],
        out_specs=pl.BlockSpec((FEAT_ROWS, lane_tile), lambda i: (0, i)),
        compiler_params=pltpu.CompilerParams(
            dimension_semantics=("parallel",)),
        cost_estimate=cost,
    )(pts)
    return out[:N_FEAT, :B].T                             # (B, 13)


def mouth_model_forward_batched(landmarks):
    """landmarks: f32[B, 15, 2] -> f32[B, 13]."""
    return _forward_impl(landmarks)


def mouth_model_forward(landmarks):
    """PyTorch-module-equivalent API: landmarks f32[1, 15, 2] -> f32[13]."""
    return _forward_impl(landmarks)[0]


# ------------------------- pure-JAX reference ------------------------------
def _ref_forward(landmarks):
    lm = landmarks[0].astype(jnp.float32)

    def d_line(C, A, B):
        x1, y1 = A; x2, y2 = B; x0, y0 = C
        num = jnp.abs((y2 - y1) * x0 - (x2 - x1) * y0 + x2 * y1 - y2 * x1)
        den = jnp.sqrt((y2 - y1) ** 2 + (x2 - x1) ** 2)
        return num / den

    def d_pp(A, B):
        return jnp.sqrt((B[0] - A[0]) ** 2 + (B[1] - A[1]) ** 2)

    p = [lm[i] for i in range(N_PTS)]
    A, B = p[R_INEYE], p[L_INEYE]
    y_reb, y_leb = d_line(p[R_EB], A, B), d_line(p[L_EB], A, B)
    h1 = jnp.sqrt(jnp.sum((p[BOT_LIP2] - p[TOP_LIP1]) ** 2))
    h2 = jnp.sqrt(jnp.sum((p[BOT_LIP1] - p[TOP_LIP2]) ** 2))
    w = jnp.sqrt(jnp.sum((p[L_MOUTH] - p[R_MOUTH]) ** 2))
    y_rm, y_lm = d_line(p[R_MOUTH], A, B), d_line(p[L_MOUTH], A, B)
    ybot1, ytop1 = d_line(p[BOT_LIP1], A, B), d_line(p[TOP_LIP1], A, B)
    ytop2, ynose = d_line(p[TOP_LIP2], A, B), d_line(p[NOSE], A, B)
    return jnp.stack([
        y_reb / y_leb,
        d_pp(p[TR_EYE], p[BR_EYE]) / d_pp(p[TR_EYE], p[R_EB]),
        d_pp(p[TL_EYE], p[BL_EYE]) / d_pp(p[TL_EYE], p[L_EB]),
        h1, h1 / w, h2 / h1, ynose / ytop2,
        y_rm - ybot1, y_lm - ybot1, y_rm - ytop1, y_lm - ytop1,
        y_rm - ytop2, y_lm - ytop2,
    ])


if __name__ == "__main__":
    key = jax.random.PRNGKey(0)
    B = 8   # small batch of faces; kernel pads lanes to 128
    landmarks = jax.random.uniform(key, (B, N_PTS, 2), jnp.float32,
                                   minval=0.0, maxval=100.0)

    # Batched path (B faces per call).
    out_batched = jax.block_until_ready(mouth_model_forward_batched(landmarks))
    assert out_batched.shape == (B, N_FEAT), out_batched.shape
    ref_batched = jax.vmap(lambda lm: _ref_forward(lm[None]))(landmarks)
    assert jnp.allclose(out_batched, ref_batched, rtol=1e-5, atol=1e-5), (
        out_batched, ref_batched)

    # Exercise lane padding (B not a multiple of 128) and the padded-lane path.
    B2 = 130
    lm2 = jax.random.uniform(jax.random.PRNGKey(1), (B2, N_PTS, 2),
                             jnp.float32, minval=0.0, maxval=100.0)
    out2 = jax.block_until_ready(mouth_model_forward_batched(lm2))
    ref2 = jax.vmap(lambda lm: _ref_forward(lm[None]))(lm2)
    assert out2.shape == (B2, N_FEAT), out2.shape
    assert jnp.allclose(out2, ref2, rtol=1e-5, atol=1e-5), (out2, ref2)

    # Module-equivalent single-face path: (1, 15, 2) -> (13,).
    single = jax.block_until_ready(mouth_model_forward(landmarks[:1]))
    assert single.shape == (N_FEAT,), single.shape
    assert jnp.allclose(single, _ref_forward(landmarks[:1]),
                        rtol=1e-5, atol=1e-5), single

    print("KERNEL_OK")
</pallas_src>

<mosaic_0001>
module attributes {stable_mosaic.version = 11 : i64} {
  func.func @mouth_kernel(%arg0: i32, %arg1: memref<2x16x128xf32, #tpu.memory_space<vmem>>, %arg2: memref<16x128xf32, #tpu.memory_space<vmem>>) attributes {dimension_semantics = [#tpu.dimension_semantics<parallel>], iteration_bounds = array<i64: 1>, scalar_prefetch = 0 : i64, scratch_operands = 0 : i64, tpu.core_type = #tpu.core_type<tc>, window_params = [{transform_indices = @transform_0, window_bounds = array<i64: 2, 16, 128>}, {transform_indices = @transform_1, window_bounds = array<i64: 16, 128>}]} {
    %c0 = arith.constant 0 : index
    %c0_0 = arith.constant 0 : index
    %c0_1 = arith.constant 0 : index
    %0 = vector.load %arg1[%c0, %c0_0, %c0_1] : memref<2x16x128xf32, #tpu.memory_space<vmem>>, vector<1x16x128xf32>
    %1 = vector.shape_cast %0 : vector<1x16x128xf32> to vector<16x128xf32>
    %c1 = arith.constant 1 : index
    %c0_2 = arith.constant 0 : index
    %c0_3 = arith.constant 0 : index
    %2 = vector.load %arg1[%c1, %c0_2, %c0_3] : memref<2x16x128xf32, #tpu.memory_space<vmem>>, vector<1x16x128xf32>
    %3 = vector.shape_cast %2 : vector<1x16x128xf32> to vector<16x128xf32>
    %4 = vector.extract_strided_slice %1 {offsets = [7, 0], sizes = [1, 128], strides = [1, 1]} : vector<16x128xf32> to vector<1x128xf32>
    %5 = vector.extract_strided_slice %3 {offsets = [7, 0], sizes = [1, 128], strides = [1, 1]} : vector<16x128xf32> to vector<1x128xf32>
    %6 = vector.extract_strided_slice %1 {offsets = [8, 0], sizes = [1, 128], strides = [1, 1]} : vector<16x128xf32> to vector<1x128xf32>
    %7 = vector.extract_strided_slice %3 {offsets = [8, 0], sizes = [1, 128], strides = [1, 1]} : vector<16x128xf32> to vector<1x128xf32>
    %8 = arith.subf %7, %5 : vector<1x128xf32>
    %9 = arith.subf %6, %4 : vector<1x128xf32>
    %10 = arith.mulf %6, %5 : vector<1x128xf32>
    %11 = arith.mulf %7, %4 : vector<1x128xf32>
    %12 = arith.subf %10, %11 : vector<1x128xf32>
    %13 = arith.mulf %8, %8 : vector<1x128xf32>
    %14 = arith.mulf %9, %9 : vector<1x128xf32>
    %15 = arith.addf %13, %14 : vector<1x128xf32>
    %16 = math.sqrt %15 : vector<1x128xf32>
    %17 = tpu.reciprocal %16 : vector<1x128xf32> -> vector<1x128xf32>
    %18 = vector.extract_strided_slice %1 {offsets = [1, 0], sizes = [1, 128], strides = [1, 1]} : vector<16x128xf32> to vector<1x128xf32>
    %19 = arith.mulf %8, %18 : vector<1x128xf32>
    %20 = vector.extract_strided_slice %3 {offsets = [1, 0], sizes = [1, 128], strides = [1, 1]} : vector<16x128xf32> to vector<1x128xf32>
    %21 = arith.mulf %9, %20 : vector<1x128xf32>
    %22 = arith.subf %19, %21 : vector<1x128xf32>
    %23 = arith.addf %22, %12 : vector<1x128xf32>
    %24 = math.absf %23 : vector<1x128xf32>
    %25 = arith.mulf %24, %17 : vector<1x128xf32>
    %26 = vector.extract_strided_slice %1 {offsets = [2, 0], sizes = [1, 128], strides = [1, 1]} : vector<16x128xf32> to vector<1x128xf32>
    %27 = arith.mulf %8, %26 : vector<1x128xf32>
    %28 = vector.extract_strided_slice %3 {offsets = [2, 0], sizes = [1, 128], strides = [1, 1]} : vector<16x128xf32> to vector<1x128xf32>
    %29 = arith.mulf %9, %28 : vector<1x128xf32>
    %30 = arith.subf %27, %29 : vector<1x128xf32>
    %31 = arith.addf %30, %12 : vector<1x128xf32>
    %32 = math.absf %31 : vector<1x128xf32>
    %33 = arith.mulf %32, %17 : vector<1x128xf32>
    %34 = vector.extract_strided_slice %1 {offsets = [13, 0], sizes = [1, 128], strides = [1, 1]} : vector<16x128xf32> to vector<1x128xf32>
    %35 = arith.mulf %8, %34 : vector<1x128xf32>
    %36 = vector.extract_strided_slice %3 {offsets = [13, 0], sizes = [1, 128], strides = [1, 1]} : vector<16x128xf32> to vector<1x128xf32>
    %37 = arith.mulf %9, %36 : vector<1x128xf32>
    %38 = arith.subf %35, %37 : vector<1x128xf32>
    %39 = arith.addf %38, %12 : vector<1x128xf32>
    %40 = math.absf %39 : vector<1x128xf32>
    %41 = arith.mulf %40, %17 : vector<1x128xf32>
    %42 = vector.extract_strided_slice %1 {offsets = [14, 0], sizes = [1, 128], strides = [1, 1]} : vector<16x128xf32> to vector<1x128xf32>
    %43 = arith.mulf %8, %42 : vector<1x128xf32>
    %44 = vector.extract_strided_slice %3 {offsets = [14, 0], sizes = [1, 128], strides = [1, 1]} : vector<16x128xf32> to vector<1x128xf32>
    %45 = arith.mulf %9, %44 : vector<1x128xf32>
    %46 = arith.subf %43, %45 : vector<1x128xf32>
    %47 = arith.addf %46, %12 : vector<1x128xf32>
    %48 = math.absf %47 : vector<1x128xf32>
    %49 = arith.mulf %48, %17 : vector<1x128xf32>
    %50 = vector.extract_strided_slice %1 {offsets = [11, 0], sizes = [1, 128], strides = [1, 1]} : vector<16x128xf32> to vector<1x128xf32>
    %51 = arith.mulf %8, %50 : vector<1x128xf32>
    %52 = vector.extract_strided_slice %3 {offsets = [11, 0], sizes = [1, 128], strides = [1, 1]} : vector<16x128xf32> to vector<1x128xf32>
    %53 = arith.mulf %9, %52 : vector<1x128xf32>
    %54 = arith.subf %51, %53 : vector<1x128xf32>
    %55 = arith.addf %54, %12 : vector<1x128xf32>
    %56 = math.absf %55 : vector<1x128xf32>
    %57 = arith.mulf %56, %17 : vector<1x128xf32>
    %58 = vector.extract_strided_slice %1 {offsets = [9, 0], sizes = [1, 128], strides = [1, 1]} : vector<16x128xf32> to vector<1x128xf32>
    %59 = arith.mulf %8, %58 : vector<1x128xf32>
    %60 = vector.extract_strided_slice %3 {offsets = [9, 0], sizes = [1, 128], strides = [1, 1]} : vector<16x128xf32> to vector<1x128xf32>
    %61 = arith.mulf %9, %60 : vector<1x128xf32>
    %62 = arith.subf %59, %61 : vector<1x128xf32>
    %63 = arith.addf %62, %12 : vector<1x128xf32>
    %64 = math.absf %63 : vector<1x128xf32>
    %65 = arith.mulf %64, %17 : vector<1x128xf32>
    %66 = vector.extract_strided_slice %1 {offsets = [10, 0], sizes = [1, 128], strides = [1, 1]} : vector<16x128xf32> to vector<1x128xf32>
    %67 = arith.mulf %8, %66 : vector<1x128xf32>
    %68 = vector.extract_strided_slice %3 {offsets = [10, 0], sizes = [1, 128], strides = [1, 1]} : vector<16x128xf32> to vector<1x128xf32>
    %69 = arith.mulf %9, %68 : vector<1x128xf32>
    %70 = arith.subf %67, %69 : vector<1x128xf32>
    %71 = arith.addf %70, %12 : vector<1x128xf32>
    %72 = math.absf %71 : vector<1x128xf32>
    %73 = arith.mulf %72, %17 : vector<1x128xf32>
    %74 = vector.extract_strided_slice %1 {offsets = [0, 0], sizes = [1, 128], strides = [1, 1]} : vector<16x128xf32> to vector<1x128xf32>
    %75 = arith.mulf %8, %74 : vector<1x128xf32>
    %76 = vector.extract_strided_slice %3 {offsets = [0, 0], sizes = [1, 128], strides = [1, 1]} : vector<16x128xf32> to vector<1x128xf32>
    %77 = arith.mulf %9, %76 : vector<1x128xf32>
    %78 = arith.subf %75, %77 : vector<1x128xf32>
    %79 = arith.addf %78, %12 : vector<1x128xf32>
    %80 = math.absf %79 : vector<1x128xf32>
    %81 = arith.mulf %80, %17 : vector<1x128xf32>
    %82 = vector.extract_strided_slice %1 {offsets = [4, 0], sizes = [1, 128], strides = [1, 1]} : vector<16x128xf32> to vector<1x128xf32>
    %83 = vector.extract_strided_slice %1 {offsets = [3, 0], sizes = [1, 128], strides = [1, 1]} : vector<16x128xf32> to vector<1x128xf32>
    %84 = arith.subf %82, %83 : vector<1x128xf32>
    %85 = vector.extract_strided_slice %3 {offsets = [4, 0], sizes = [1, 128], strides = [1, 1]} : vector<16x128xf32> to vector<1x128xf32>
    %86 = vector.extract_strided_slice %3 {offsets = [3, 0], sizes = [1, 128], strides = [1, 1]} : vector<16x128xf32> to vector<1x128xf32>
    %87 = arith.subf %85, %86 : vector<1x128xf32>
    %88 = arith.mulf %84, %84 : vector<1x128xf32>
    %89 = arith.mulf %87, %87 : vector<1x128xf32>
    %90 = arith.addf %88, %89 : vector<1x128xf32>
    %91 = math.sqrt %90 : vector<1x128xf32>
    %92 = vector.extract_strided_slice %1 {offsets = [6, 0], sizes = [1, 128], strides = [1, 1]} : vector<16x128xf32> to vector<1x128xf32>
    %93 = vector.extract_strided_slice %1 {offsets = [5, 0], sizes = [1, 128], strides = [1, 1]} : vector<16x128xf32> to vector<1x128xf32>
    %94 = arith.subf %92, %93 : vector<1x128xf32>
    %95 = vector.extract_strided_slice %3 {offsets = [6, 0], sizes = [1, 128], strides = [1, 1]} : vector<16x128xf32> to vector<1x128xf32>
    %96 = vector.extract_strided_slice %3 {offsets = [5, 0], sizes = [1, 128], strides = [1, 1]} : vector<16x128xf32> to vector<1x128xf32>
    %97 = arith.subf %95, %96 : vector<1x128xf32>
    %98 = arith.mulf %94, %94 : vector<1x128xf32>
    %99 = arith.mulf %97, %97 : vector<1x128xf32>
    %100 = arith.addf %98, %99 : vector<1x128xf32>
    %101 = math.sqrt %100 : vector<1x128xf32>
    %102 = vector.extract_strided_slice %1 {offsets = [1, 0], sizes = [1, 128], strides = [1, 1]} : vector<16x128xf32> to vector<1x128xf32>
    %103 = vector.extract_strided_slice %1 {offsets = [3, 0], sizes = [1, 128], strides = [1, 1]} : vector<16x128xf32> to vector<1x128xf32>
    %104 = arith.subf %102, %103 : vector<1x128xf32>
    %105 = vector.extract_strided_slice %3 {offsets = [1, 0], sizes = [1, 128], strides = [1, 1]} : vector<16x128xf32> to vector<1x128xf32>
    %106 = vector.extract_strided_slice %3 {offsets = [3, 0], sizes = [1, 128], strides = [1, 1]} : vector<16x128xf32> to vector<1x128xf32>
    %107 = arith.subf %105, %106 : vector<1x128xf32>
    %108 = arith.mulf %104, %104 : vector<1x128xf32>
    %109 = arith.mulf %107, %107 : vector<1x128xf32>
    %110 = arith.addf %108, %109 : vector<1x128xf32>
    %111 = math.sqrt %110 : vector<1x128xf32>
    %112 = vector.extract_strided_slice %1 {offsets = [2, 0], sizes = [1, 128], strides = [1, 1]} : vector<16x128xf32> to vector<1x128xf32>
    %113 = vector.extract_strided_slice %1 {offsets = [5, 0], sizes = [1, 128], strides = [1, 1]} : vector<16x128xf32> to vector<1x128xf32>
    %114 = arith.subf %112, %113 : vector<1x128xf32>
    %115 = vector.extract_strided_slice %3 {offsets = [2, 0], sizes = [1, 128], strides = [1, 1]} : vector<16x128xf32> to vector<1x128xf32>
    %116 = vector.extract_strided_slice %3 {offsets = [5, 0], sizes = [1, 128], strides = [1, 1]} : vector<16x128xf32> to vector<1x128xf32>
    %117 = arith.subf %115, %116 : vector<1x128xf32>
    %118 = arith.mulf %114, %114 : vector<1x128xf32>
    %119 = arith.mulf %117, %117 : vector<1x128xf32>
    %120 = arith.addf %118, %119 : vector<1x128xf32>
    %121 = math.sqrt %120 : vector<1x128xf32>
    %122 = vector.extract_strided_slice %1 {offsets = [12, 0], sizes = [1, 128], strides = [1, 1]} : vector<16x128xf32> to vector<1x128xf32>
    %123 = vector.extract_strided_slice %1 {offsets = [9, 0], sizes = [1, 128], strides = [1, 1]} : vector<16x128xf32> to vector<1x128xf32>
    %124 = arith.subf %122, %123 : vector<1x128xf32>
    %125 = vector.extract_strided_slice %3 {offsets = [12, 0], sizes = [1, 128], strides = [1, 1]} : vector<16x128xf32> to vector<1x128xf32>
    %126 = vector.extract_strided_slice %3 {offsets = [9, 0], sizes = [1, 128], strides = [1, 1]} : vector<16x128xf32> to vector<1x128xf32>
    %127 = arith.subf %125, %126 : vector<1x128xf32>
    %128 = arith.mulf %124, %124 : vector<1x128xf32>
    %129 = arith.mulf %127, %127 : vector<1x128xf32>
    %130 = arith.addf %128, %129 : vector<1x128xf32>
    %131 = math.sqrt %130 : vector<1x128xf32>
    %132 = vector.extract_strided_slice %1 {offsets = [11, 0], sizes = [1, 128], strides = [1, 1]} : vector<16x128xf32> to vector<1x128xf32>
    %133 = vector.extract_strided_slice %1 {offsets = [10, 0], sizes = [1, 128], strides = [1, 1]} : vector<16x128xf32> to vector<1x128xf32>
    %134 = arith.subf %132, %133 : vector<1x128xf32>
    %135 = vector.extract_strided_slice %3 {offsets = [11, 0], sizes = [1, 128], strides = [1, 1]} : vector<16x128xf32> to vector<1x128xf32>
    %136 = vector.extract_strided_slice %3 {offsets = [10, 0], sizes = [1, 128], strides = [1, 1]} : vector<16x128xf32> to vector<1x128xf32>
    %137 = arith.subf %135, %136 : vector<1x128xf32>
    %138 = arith.mulf %134, %134 : vector<1x128xf32>
    %139 = arith.mulf %137, %137 : vector<1x128xf32>
    %140 = arith.addf %138, %139 : vector<1x128xf32>
    %141 = math.sqrt %140 : vector<1x128xf32>
    %142 = vector.extract_strided_slice %1 {offsets = [14, 0], sizes = [1, 128], strides = [1, 1]} : vector<16x128xf32> to vector<1x128xf32>
    %143 = vector.extract_strided_slice %1 {offsets = [13, 0], sizes = [1, 128], strides = [1, 1]} : vector<16x128xf32> to vector<1x128xf32>
    %144 = arith.subf %142, %143 : vector<1x128xf32>
    %145 = vector.extract_strided_slice %3 {offsets = [14, 0], sizes = [1, 128], strides = [1, 1]} : vector<16x128xf32> to vector<1x128xf32>
    %146 = vector.extract_strided_slice %3 {offsets = [13, 0], sizes = [1, 128], strides = [1, 1]} : vector<16x128xf32> to vector<1x128xf32>
    %147 = arith.subf %145, %146 : vector<1x128xf32>
    %148 = arith.mulf %144, %144 : vector<1x128xf32>
    %149 = arith.mulf %147, %147 : vector<1x128xf32>
    %150 = arith.addf %148, %149 : vector<1x128xf32>
    %151 = math.sqrt %150 : vector<1x128xf32>
    %152 = arith.divf %25, %33 : vector<1x128xf32>
    %153 = arith.divf %91, %111 : vector<1x128xf32>
    %154 = arith.divf %101, %121 : vector<1x128xf32>
    %155 = arith.divf %131, %151 : vector<1x128xf32>
    %156 = arith.divf %141, %131 : vector<1x128xf32>
    %157 = arith.divf %81, %73 : vector<1x128xf32>
    %158 = arith.subf %41, %57 : vector<1x128xf32>
    %159 = arith.subf %49, %57 : vector<1x128xf32>
    %160 = arith.subf %41, %65 : vector<1x128xf32>
    %161 = arith.subf %49, %65 : vector<1x128xf32>
    %162 = arith.subf %41, %73 : vector<1x128xf32>
    %163 = arith.subf %49, %73 : vector<1x128xf32>
    %c0_4 = arith.constant 0 : index
    %c0_5 = arith.constant 0 : index
    %164 = vector.load %arg2[%c0_4, %c0_5] : memref<16x128xf32, #tpu.memory_space<vmem>>, vector<1x128xf32>
    tpu.vector_store %arg2[%c0_4, %c0_5], %152 {strides = array<i32>} : memref<16x128xf32, #tpu.memory_space<vmem>>, vector<1x128xf32>,
    %c1_6 = arith.constant 1 : index
    %c0_7 = arith.constant 0 : index
    %165 = vector.load %arg2[%c1_6, %c0_7] : memref<16x128xf32, #tpu.memory_space<vmem>>, vector<1x128xf32>
    tpu.vector_store %arg2[%c1_6, %c0_7], %153 {strides = array<i32>} : memref<16x128xf32, #tpu.memory_space<vmem>>, vector<1x128xf32>,
    %c2 = arith.constant 2 : index
    %c0_8 = arith.constant 0 : index
    %166 = vector.load %arg2[%c2, %c0_8] : memref<16x128xf32, #tpu.memory_space<vmem>>, vector<1x128xf32>
    tpu.vector_store %arg2[%c2, %c0_8], %154 {strides = array<i32>} : memref<16x128xf32, #tpu.memory_space<vmem>>, vector<1x128xf32>,
    %c3 = arith.constant 3 : index
    %c0_9 = arith.constant 0 : index
    %167 = vector.load %arg2[%c3, %c0_9] : memref<16x128xf32, #tpu.memory_space<vmem>>, vector<1x128xf32>
    tpu.vector_store %arg2[%c3, %c0_9], %131 {strides = array<i32>} : memref<16x128xf32, #tpu.memory_space<vmem>>, vector<1x128xf32>,
    %c4 = arith.constant 4 : index
    %c0_10 = arith.constant 0 : index
    %168 = vector.load %arg2[%c4, %c0_10] : memref<16x128xf32, #tpu.memory_space<vmem>>, vector<1x128xf32>
    tpu.vector_store %arg2[%c4, %c0_10], %155 {strides = array<i32>} : memref<16x128xf32, #tpu.memory_space<vmem>>, vector<1x128xf32>,
    %c5 = arith.constant 5 : index
    %c0_11 = arith.constant 0 : index
    %169 = vector.load %arg2[%c5, %c0_11] : memref<16x128xf32, #tpu.memory_space<vmem>>, vector<1x128xf32>
    tpu.vector_store %arg2[%c5, %c0_11], %156 {strides = array<i32>} : memref<16x128xf32, #tpu.memory_space<vmem>>, vector<1x128xf32>,
    %c6 = arith.constant 6 : index
    %c0_12 = arith.constant 0 : index
    %170 = vector.load %arg2[%c6, %c0_12] : memref<16x128xf32, #tpu.memory_space<vmem>>, vector<1x128xf32>
    tpu.vector_store %arg2[%c6, %c0_12], %157 {strides = array<i32>} : memref<16x128xf32, #tpu.memory_space<vmem>>, vector<1x128xf32>,
    %c7 = arith.constant 7 : index
    %c0_13 = arith.constant 0 : index
    %171 = vector.load %arg2[%c7, %c0_13] : memref<16x128xf32, #tpu.memory_space<vmem>>, vector<1x128xf32>
    tpu.vector_store %arg2[%c7, %c0_13], %158 {strides = array<i32>} : memref<16x128xf32, #tpu.memory_space<vmem>>, vector<1x128xf32>,
    %c8 = arith.constant 8 : index
    %c0_14 = arith.constant 0 : index
    %172 = vector.load %arg2[%c8, %c0_14] : memref<16x128xf32, #tpu.memory_space<vmem>>, vector<1x128xf32>
    tpu.vector_store %arg2[%c8, %c0_14], %159 {strides = array<i32>} : memref<16x128xf32, #tpu.memory_space<vmem>>, vector<1x128xf32>,
    %c9 = arith.constant 9 : index
    %c0_15 = arith.constant 0 : index
    %173 = vector.load %arg2[%c9, %c0_15] : memref<16x128xf32, #tpu.memory_space<vmem>>, vector<1x128xf32>
    tpu.vector_store %arg2[%c9, %c0_15], %160 {strides = array<i32>} : memref<16x128xf32, #tpu.memory_space<vmem>>, vector<1x128xf32>,
    %c10 = arith.constant 10 : index
    %c0_16 = arith.constant 0 : index
    %174 = vector.load %arg2[%c10, %c0_16] : memref<16x128xf32, #tpu.memory_space<vmem>>, vector<1x128xf32>
    tpu.vector_store %arg2[%c10, %c0_16], %161 {strides = array<i32>} : memref<16x128xf32, #tpu.memory_space<vmem>>, vector<1x128xf32>,
    %c11 = arith.constant 11 : index
    %c0_17 = arith.constant 0 : index
    %175 = vector.load %arg2[%c11, %c0_17] : memref<16x128xf32, #tpu.memory_space<vmem>>, vector<1x128xf32>
    tpu.vector_store %arg2[%c11, %c0_17], %162 {strides = array<i32>} : memref<16x128xf32, #tpu.memory_space<vmem>>, vector<1x128xf32>,
    %c12 = arith.constant 12 : index
    %c0_18 = arith.constant 0 : index
    %176 = vector.load %arg2[%c12, %c0_18] : memref<16x128xf32, #tpu.memory_space<vmem>>, vector<1x128xf32>
    tpu.vector_store %arg2[%c12, %c0_18], %163 {strides = array<i32>} : memref<16x128xf32, #tpu.memory_space<vmem>>, vector<1x128xf32>,
    %cst = arith.constant 0.000000e+00 : f32
    %177 = vector.broadcast %cst : f32 to vector<3x128xf32>
    %c13 = arith.constant 13 : index
    %c0_19 = arith.constant 0 : index
    %178 = vector.load %arg2[%c13, %c0_19] : memref<16x128xf32, #tpu.memory_space<vmem>>, vector<3x128xf32>
    tpu.vector_store %arg2[%c13, %c0_19], %177 {strides = array<i32>} : memref<16x128xf32, #tpu.memory_space<vmem>>, vector<3x128xf32>,
    return
  }
  func.func @transform_0(%arg0: i32) -> (i32, i32, i32) {
    %c0_i32 = arith.constant 0 : i32
    %c0_i32_0 = arith.constant 0 : i32
    %c0_i32_1 = arith.constant 0 : i32
    return %c0_i32, %c0_i32_0, %arg0 : i32, i32, i32
  }
  func.func @transform_1(%arg0: i32) -> (i32, i32) {
    %c0_i32 = arith.constant 0 : i32
    %c0_i32_0 = arith.constant 0 : i32
    return %c0_i32, %arg0 : i32, i32
  }
}

</mosaic_0001>

<llo_original>
// kernel: _forward_impl.1
$region0: #{_forward_impl.1}
  #allocation0 [shape = 'u32[]', space=smem, size = 0x4, offset = 0x4, fixed_abs, tag = 'smem constant byte address 0x4 - core index']
  #allocation1 [shape = 'u32[144,128]{1,0:T(1,128)}', space=vmem, size = 0x12000, scoped, tag = 'internal scratch']
  %s0 = inlined_call_operand.vmem [shape: f32[2,16,128], index: 0, kind: input, shape index: {}]
  %s1 = inlined_call_operand.vmem [shape: f32[16,128], index: 1, kind: output, shape index: {}]
  %s2 = sld [smem:[#allocation0]]
  $region14: #{_forward_impl.1} parent=0
    _
  %s4 = ssub.s32 1, %s2
  %s5 = scalar_select 0, %s4, %s2
  // Predicated region
  $region2: #{_forward_impl.1} parent=0 // pred_check
    _
  $region3: #{_forward_impl.1} parent=0 // pred_check_branch
    %7 = sbr.rel (0) target = $region5
  $region4: #{_forward_impl.1} parent=0 // pred_region
    _
  $region5: #{_forward_impl.1} parent=0 // pred_fallthru
    _
  %v8 = vld [vmem:[%s0] sm:$0xff]
  %v9 = vld [vmem:[%s0 + $0x8] sm:$0xff]
  %s10 = scalar_lea.vmem %s0, 16
  %v11 = vld [vmem:[%s10] sm:$0xff]
  %v12 = vld [vmem:[%s10 + $0x8] sm:$0xff]
  %v14 = vrot.slane %v11, 7
  %v16 = vsub.f32 %v12, %v14
  %v18 = vrot.slane %v8, 7
  %v20 = vsub.f32 %v9, %v18
  %v21 = vmul.f32 %v9, %v14
  %v22 = vmul.f32 %v12, %v18
  %v23 = vsub.f32 %v21, %v22
  %v24 = vmul.f32 %v16, %v16
  %v25 = vmul.f32 %v20, %v20
  %v26 = vadd.f32 %v24, %v25
  %v27 = vrsqrt.pop %v26
  %v28 = vmul.f32 %v26, %v27
  %vm29 = vcmp.eq.f32.partialorder %v26, inf
  %v30 = vsel %vm29, %v26, %v28
  %vm31 = vcmp.eq.f32.partialorder %v26, 0.0
  %v32 = vand.u32 %v26, 2147483648
  %v33 = vsel %vm31, %v32, %v30
  %v34 = vrcp.pop %v33
  %v35 = vrot.slane %v8, 1
  %v37 = vmul.f32 %v16, %v35
  %v38 = vrot.slane %v11, 1
  %v40 = vmul.f32 %v20, %v38
  %v41 = vsub.f32 %v37, %v40
  %v42 = vadd.f32 %v41, %v23
  %v43 = vand.u32 2147483647, %v42
  %v44 = vmul.f32 %v43, %v34
  %v45 = vrot.slane %v8, 2
  %v47 = vmul.f32 %v16, %v45
  %v48 = vrot.slane %v11, 2
  %v50 = vmul.f32 %v20, %v48
  %v51 = vsub.f32 %v47, %v50
  %v52 = vadd.f32 %v51, %v23
  %v53 = vand.u32 2147483647, %v52
  %v54 = vmul.f32 %v53, %v34
  %v56 = vrot.slane %v9, 5
  %v58 = vmul.f32 %v16, %v56
  %v60 = vrot.slane %v12, 5
  %v62 = vmul.f32 %v20, %v60
  %v63 = vsub.f32 %v58, %v62
  %v64 = vadd.f32 %v63, %v23
  %v65 = vand.u32 2147483647, %v64
  %v66 = vmul.f32 %v65, %v34
  %v67 = vrot.slane %v9, 6
  %v69 = vmul.f32 %v16, %v67
  %v70 = vrot.slane %v12, 6
  %v72 = vmul.f32 %v20, %v70
  %v73 = vsub.f32 %v69, %v72
  %v74 = vadd.f32 %v73, %v23
  %v75 = vand.u32 2147483647, %v74
  %v76 = vmul.f32 %v75, %v34
  %v77 = vrot.slane %v9, 3
  %v79 = vmul.f32 %v16, %v77
  %v80 = vrot.slane %v12, 3
  %v82 = vmul.f32 %v20, %v80
  %v83 = vsub.f32 %v79, %v82
  %v84 = vadd.f32 %v83, %v23
  %v85 = vand.u32 2147483647, %v84
  %v86 = vmul.f32 %v85, %v34
  %v87 = vrot.slane %v9, 1
  %v89 = vmul.f32 %v16, %v87
  %v90 = vrot.slane %v12, 1
  %v92 = vmul.f32 %v20, %v90
  %v93 = vsub.f32 %v89, %v92
  %v94 = vadd.f32 %v93, %v23
  %v95 = vand.u32 2147483647, %v94
  %v96 = vmul.f32 %v95, %v34
  %v97 = vrot.slane %v9, 2
  %v99 = vmul.f32 %v16, %v97
  %v100 = vrot.slane %v12, 2
  %v102 = vmul.f32 %v20, %v100
  %v103 = vsub.f32 %v99, %v102
  %v104 = vadd.f32 %v103, %v23
  %v105 = vand.u32 2147483647, %v104
  %v106 = vmul.f32 %v105, %v34
  %v107 = vmul.f32 %v16, %v8
  %v108 = vmul.f32 %v20, %v11
  %v109 = vsub.f32 %v107, %v108
  %v110 = vadd.f32 %v109, %v23
  %v111 = vand.u32 2147483647, %v110
  %v112 = vmul.f32 %v111, %v34
  %v113 = vsub.f32 %v8, %v18
  %v114 = vsub.f32 %v11, %v14
  %v115 = vmul.f32 %v113, %v113
  %v116 = vmul.f32 %v114, %v114
  %v117 = vadd.f32 %v115, %v116
  %v118 = vrsqrt.pop %v117
  %v119 = vmul.f32 %v117, %v118
  %vm120 = vcmp.eq.f32.partialorder %v117, inf
  %v121 = vsel %vm120, %v117, %v119
  %vm122 = vcmp.eq.f32.partialorder %v117, 0.0
  %v123 = vand.u32 %v117, 2147483648
  %v124 = vsel %vm122, %v123, %v121
  %v125 = vsub.f32 %v8, %v45
  %v126 = vsub.f32 %v11, %v48
  %v127 = vmul.f32 %v125, %v125
  %v128 = vmul.f32 %v126, %v126
  %v129 = vadd.f32 %v127, %v128
  %v130 = vrsqrt.pop %v129
  %v131 = vmul.f32 %v129, %v130
  %vm132 = vcmp.eq.f32.partialorder %v129, inf
  %v133 = vsel %vm132, %v129, %v131
  %vm134 = vcmp.eq.f32.partialorder %v129, 0.0
  %v135 = vand.u32 %v129, 2147483648
  %v136 = vsel %vm134, %v135, %v133
  %v137 = vrot.slane %v8, 3
  %v139 = vsub.f32 %v8, %v137
  %v140 = vrot.slane %v11, 3
  %v142 = vsub.f32 %v11, %v140
  %v143 = vmul.f32 %v139, %v139
  %v144 = vmul.f32 %v142, %v142
  %v145 = vadd.f32 %v143, %v144
  %v146 = vrsqrt.pop %v145
  %v147 = vmul.f32 %v145, %v146
  %vm148 = vcmp.eq.f32.partialorder %v145, inf
  %v149 = vsel %vm148, %v145, %v147
  %vm150 = vcmp.eq.f32.partialorder %v145, 0.0
  %v151 = vand.u32 %v145, 2147483648
  %v152 = vsel %vm150, %v151, %v149
  %v153 = vsub.f32 %v9, %v56
  %v154 = vsub.f32 %v12, %v60
  %v155 = vmul.f32 %v153, %v153
  %v156 = vmul.f32 %v154, %v154
  %v157 = vadd.f32 %v155, %v156
  %v158 = vrsqrt.pop %v157
  %v159 = vmul.f32 %v157, %v158
  %vm160 = vcmp.eq.f32.partialorder %v157, inf
  %v161 = vsel %vm160, %v157, %v159
  %vm162 = vcmp.eq.f32.partialorder %v157, 0.0
  %v163 = vand.u32 %v157, 2147483648
  %v164 = vsel %vm162, %v163, %v161
  %v165 = vrot.slane %v9, 7
  %v167 = vsub.f32 %v9, %v165
  %v168 = vrot.slane %v12, 7
  %v170 = vsub.f32 %v12, %v168
  %v171 = vmul.f32 %v167, %v167
  %v172 = vmul.f32 %v170, %v170
  %v173 = vadd.f32 %v171, %v172
  %v174 = vrsqrt.pop %v173
  %v175 = vmul.f32 %v173, %v174
  %vm176 = vcmp.eq.f32.partialorder %v173, inf
  %v177 = vsel %vm176, %v173, %v175
  %vm178 = vcmp.eq.f32.partialorder %v173, 0.0
  %v179 = vand.u32 %v173, 2147483648
  %v180 = vsel %vm178, %v179, %v177
  %v181 = vrcp.pop %v54
  %v182 = vmul.f32 %v44, %v181
  %v184 = vrot.slane %v136, 5
  %v186 = vrcp.pop %v184
  %v187 = vmul.f32 %v124, %v186
  %v189 = vrot.slane %v152, 4
  %v191 = vrcp.pop %v189
  %v192 = vmul.f32 %v124, %v191
  %v194 = vrot.slane %v180, 2
  %v196 = vrcp.pop %v194
  %v197 = vmul.f32 %v164, %v196
  %v199 = vrot.slane %v164, 1
  %v201 = vrcp.pop %v199
  %v202 = vmul.f32 %v180, %v201
  %v203 = vrcp.pop %v106
  %v204 = vmul.f32 %v112, %v203
  %v205 = vsub.f32 %v66, %v86
  %v206 = vsub.f32 %v76, %v86
  %v207 = vsub.f32 %v66, %v96
  %v208 = vsub.f32 %v76, %v96
  %v209 = vsub.f32 %v66, %v106
  %v210 = vsub.f32 %v76, %v106
  %211 = vst [vmem:[%s1] sm:$0x1] %v182
  %212 = vst [vmem:[%s1 - $0x3] sm:$0x10] %v187
  %213 = vst [vmem:[%s1 - $0x4] sm:$0x40] %v192
  %214 = vst [vmem:[%s1 - $0x1] sm:$0x10] %v164
  %215 = vst [vmem:[%s1] sm:$0x10] %v197
  %216 = vst [vmem:[%s1 + $0x2] sm:$0x8] %v202
  %217 = vst [vmem:[%s1 + $0x6] sm:$0x1] %v204
  %218 = vst [vmem:[%s1 + $0x7] sm:$0x1] %v205
  %219 = vst [vmem:[%s1 + $0x8] sm:$0x1] %v206
  %220 = vst [vmem:[%s1 + $0x9] sm:$0x1] %v207
  %221 = vst [vmem:[%s1 + $0xa] sm:$0x1] %v208
  %222 = vst [vmem:[%s1 + $0xb] sm:$0x1] %v209
  %223 = vst [vmem:[%s1 + $0xc] sm:$0x1] %v210
  %224 = vst [vmem:[%s1 + $0xd] sm:$0x7] 0.0
  // Predicated region
  $region6: #{_forward_impl.1} parent=0 // pred_check
    _
  $region7: #{_forward_impl.1} parent=0 // pred_check_branch
    %226 = sbr.rel (0) target = $region9
  $region8: #{_forward_impl.1} parent=0 // pred_region
    _
  $region9: #{_forward_impl.1} parent=0 // pred_fallthru
    _
  // Predicated region
  $region10: #{_forward_impl.1} parent=0 // pred_check
    _
  $region11: #{_forward_impl.1} parent=0 // pred_check_branch
    %228 = sbr.rel (0) target = $region13
  $region12: #{_forward_impl.1} parent=0 // pred_region
    _
  $region13: #{_forward_impl.1} parent=0 // pred_fallthru
    _

</llo_original>
